<compile_context>
chip_gen: v7x
topology: tpu7x:2x2x1
jax: 0.10.0
libtpu: 0.0.40
codegen_flags: <defaults>
</compile_context>

<pallas_src>
import jax
import jax.numpy as jnp
import numpy as np
from jax import lax
from jax.experimental import pallas as pl
from jax.experimental.pallas import tpu as pltpu


# ----------------------------------------------------------------------------
# Kernel: GroupNorm(1, C) over BN samples, each laid out as a (R, L) slab.
# ----------------------------------------------------------------------------
def prenorm_gn_kernel(x_ref, g_ref, b_ref, o_ref):
    """x_ref/o_ref: (BN, R, L); g_ref/b_ref: (R, L) pre-broadcast affine.

    Single-group GroupNorm == per-sample normalization over the whole slab
    (biased variance, eps=1e-5), matching torch.nn.GroupNorm(1, dim).
    Statistics are accumulated in f32 regardless of the input dtype.
    """
    x = x_ref[...].astype(jnp.float32)                  # (BN, R, L)
    inv_n = 1.0 / float(x.shape[1] * x.shape[2])

    # One traversal: both sums before any elementwise output math.
    s1 = jnp.sum(x, axis=(1, 2), keepdims=True)         # (BN, 1, 1)
    s2 = jnp.sum(x * x, axis=(1, 2), keepdims=True)     # (BN, 1, 1)
    mean = s1 * inv_n
    var = jnp.maximum(s2 * inv_n - mean * mean, 0.0)
    inv_std = lax.rsqrt(var + 1e-5)                      # (BN, 1, 1)

    g = g_ref[...][None]                                 # (1, R, L)
    b = b_ref[...][None]

    # Re-read x from VMEM for the store (avoids keeping a full-tile centered
    # temp live across the reduction chain).
    # TODO(synk): if the wrapped fn runs in bf16, store bf16 here to halve the
    # HBM write stream; kept in the input dtype to match the f32 reference.
    o_ref[...] = (
        (x_ref[...].astype(jnp.float32) - mean) * inv_std * g + b
    ).astype(o_ref.dtype)


# ----------------------------------------------------------------------------
# Wrapper
# ----------------------------------------------------------------------------
def _pick_batch_block(n, bytes_per_sample):
    """Samples per grid step: multi-MiB blocks, VMEM-safe, >= 2 grid steps."""
    target_bytes = 4 * 1024 * 1024          # ~85%-of-roofline tile territory
    vmem_cap_bytes = 12 * 1024 * 1024       # 4x (dbl-buf in+out) <= 48 MiB (v7x)
    bn_cap = max(1, min(target_bytes // bytes_per_sample,
                        vmem_cap_bytes // bytes_per_sample))
    if n >= 2:
        bn_cap = min(bn_cap, (n + 1) // 2)   # keep >= 2 grid steps (v7x 2 TCs)
    bn_cap = max(1, min(bn_cap, n))
    # Largest divisor of n not exceeding the cap (no partial blocks -> stats
    # never see padding).
    return max(d for d in range(1, bn_cap + 1) if n % d == 0)


def prenorm_forward(x_nchw, gamma, beta, fn, **kwargs):
    """PyTorch PreNorm.forward: fn(GroupNorm(1, dim)(x), **kwargs).

    x_nchw: (N, C, H, W); gamma/beta: (C,) affine parameters.
    fn: arbitrary JAX callable applied to the normalized tensor.
    """
    N, C, H, W = x_nchw.shape
    HW = H * W
    total = C * HW

    # Lane-dense and (when possible) sublane-full per-sample layout.
    if total % 128 == 0:
        R, L = total // 128, 128
    else:
        R, L = C, HW  # fallback: lane axis = HW (full-extent block, still legal)

    xf = x_nchw.reshape(N, R, L)  # contiguous reshape — layout plumbing only

    # Pre-broadcast per-channel affine to the slab layout (fetched once:
    # constant index_map keeps the block resident across grid steps).
    g_exp = jnp.broadcast_to(
        gamma.astype(jnp.float32)[:, None], (C, HW)).reshape(R, L)
    b_exp = jnp.broadcast_to(
        beta.astype(jnp.float32)[:, None], (C, HW)).reshape(R, L)

    itemsize = jnp.dtype(x_nchw.dtype).itemsize
    bytes_per_sample = total * itemsize
    bn = _pick_batch_block(N, bytes_per_sample)
    grid = (N // bn,)

    block_bytes = bn * bytes_per_sample
    param_bytes = 2 * total * 4
    vmem_needed = 4 * block_bytes + param_bytes + (2 << 20)
    vmem_limit = int(min(64 << 20, max(32 << 20, vmem_needed)))

    normed = pl.pallas_call(
        prenorm_gn_kernel,
        out_shape=jax.ShapeDtypeStruct((N, R, L), x_nchw.dtype),
        grid=grid,
        in_specs=[
            pl.BlockSpec((bn, R, L), lambda n: (n, 0, 0)),
            pl.BlockSpec((R, L), lambda n: (0, 0)),
            pl.BlockSpec((R, L), lambda n: (0, 0)),
        ],
        out_specs=pl.BlockSpec((bn, R, L), lambda n: (n, 0, 0)),
        compiler_params=pltpu.CompilerParams(
            dimension_semantics=("parallel",),
            vmem_limit_bytes=vmem_limit,
        ),
    )(xf, g_exp, b_exp)

    normed = normed.reshape(N, C, H, W)
    # TODO(synk): `fn` is an arbitrary wrapped module (Attention in the source
    # repo); it is applied here as a plain JAX callable, not inside the kernel.
    return fn(normed, **kwargs)


# ----------------------------------------------------------------------------
# Pure-JAX reference (for correctness check)
# ----------------------------------------------------------------------------
def prenorm_reference(x_nchw, gamma, beta, fn, **kwargs):
    mean = x_nchw.mean(axis=(1, 2, 3), keepdims=True)
    var = ((x_nchw - mean) ** 2).mean(axis=(1, 2, 3), keepdims=True)
    xn = (x_nchw - mean) / jnp.sqrt(var + 1e-5)
    xn = xn * gamma[None, :, None, None] + beta[None, :, None, None]
    return fn(xn, **kwargs)


# ----------------------------------------------------------------------------
# Demo
# ----------------------------------------------------------------------------
if __name__ == "__main__":
    N, C, H, W = 2, 4, 16, 16

    key = jax.random.PRNGKey(0)
    kx, kg, kb, kw, kbf = jax.random.split(key, 5)
    x = jax.random.normal(kx, (N, C, H, W), jnp.float32)
    gamma = 1.0 + 0.1 * jax.random.normal(kg, (C,), jnp.float32)
    beta = 0.1 * jax.random.normal(kb, (C,), jnp.float32)

    # A simple stand-in for the wrapped fn: a 1x1 conv (channel mix) in JAX.
    w_fn = 0.1 * jax.random.normal(kw, (C, C), jnp.float32)
    b_fn = 0.1 * jax.random.normal(kbf, (C,), jnp.float32)

    def fn(z):
        return jnp.einsum("nchw,co->nohw", z, w_fn) + b_fn[None, :, None, None]

    out = prenorm_forward(x, gamma, beta, fn)
    out = jax.block_until_ready(out)

    ref = jax.block_until_ready(prenorm_reference(x, gamma, beta, fn))
    np.testing.assert_allclose(np.asarray(out), np.asarray(ref),
                               rtol=1e-4, atol=1e-4)
    print("KERNEL_OK")
</pallas_src>

<mosaic_0001>
module attributes {stable_mosaic.version = 11 : i64} {
  func.func @prenorm_gn_kernel(%arg0: i32, %arg1: memref<1x8x128xf32, #tpu.memory_space<vmem>>, %arg2: memref<8x128xf32, #tpu.memory_space<vmem>>, %arg3: memref<8x128xf32, #tpu.memory_space<vmem>>, %arg4: memref<1x8x128xf32, #tpu.memory_space<vmem>>) attributes {dimension_semantics = [#tpu.dimension_semantics<parallel>], iteration_bounds = array<i64: 2>, scalar_prefetch = 0 : i64, scratch_operands = 0 : i64, tpu.core_type = #tpu.core_type<tc>, window_params = [{transform_indices = @transform_0, window_bounds = array<i64: 1, 8, 128>}, {pipeline_mode = #tpu.pipeline_mode<synchronous>, transform_indices = @transform_1, window_bounds = array<i64: 8, 128>}, {pipeline_mode = #tpu.pipeline_mode<synchronous>, transform_indices = @transform_2, window_bounds = array<i64: 8, 128>}, {transform_indices = @transform_3, window_bounds = array<i64: 1, 8, 128>}]} {
    %c0 = arith.constant 0 : index
    %c0_0 = arith.constant 0 : index
    %c0_1 = arith.constant 0 : index
    %0 = vector.load %arg1[%c0, %c0_0, %c0_1] : memref<1x8x128xf32, #tpu.memory_space<vmem>>, vector<1x8x128xf32>
    %cst = arith.constant dense<0.000000e+00> : vector<1xf32>
    %1 = vector.multi_reduction <add>, %0, %cst [1, 2] : vector<1x8x128xf32> to vector<1xf32>
    %2 = vector.shape_cast %1 : vector<1xf32> to vector<1x1x1xf32>
    %3 = arith.mulf %0, %0 : vector<1x8x128xf32>
    %cst_2 = arith.constant dense<0.000000e+00> : vector<1xf32>
    %4 = vector.multi_reduction <add>, %3, %cst_2 [1, 2] : vector<1x8x128xf32> to vector<1xf32>
    %5 = vector.shape_cast %4 : vector<1xf32> to vector<1x1x1xf32>
    %cst_3 = arith.constant 9.765625E-4 : f32
    %6 = vector.broadcast %cst_3 : f32 to vector<1x1x1xf32>
    %7 = arith.mulf %2, %6 : vector<1x1x1xf32>
    %cst_4 = arith.constant 9.765625E-4 : f32
    %8 = vector.broadcast %cst_4 : f32 to vector<1x1x1xf32>
    %9 = arith.mulf %5, %8 : vector<1x1x1xf32>
    %10 = arith.mulf %7, %7 : vector<1x1x1xf32>
    %11 = arith.subf %9, %10 : vector<1x1x1xf32>
    %cst_5 = arith.constant 0.000000e+00 : f32
    %12 = vector.broadcast %cst_5 : f32 to vector<1x1x1xf32>
    %13 = arith.maximumf %11, %12 : vector<1x1x1xf32>
    %cst_6 = arith.constant 9.99999974E-6 : f32
    %14 = vector.broadcast %cst_6 : f32 to vector<1x1x1xf32>
    %15 = arith.addf %13, %14 : vector<1x1x1xf32>
    %16 = math.rsqrt %15 : vector<1x1x1xf32>
    %c0_7 = arith.constant 0 : index
    %c0_8 = arith.constant 0 : index
    %17 = vector.load %arg2[%c0_7, %c0_8] : memref<8x128xf32, #tpu.memory_space<vmem>>, vector<8x128xf32>
    %18 = vector.shape_cast %17 : vector<8x128xf32> to vector<1x8x128xf32>
    %c0_9 = arith.constant 0 : index
    %c0_10 = arith.constant 0 : index
    %19 = vector.load %arg3[%c0_9, %c0_10] : memref<8x128xf32, #tpu.memory_space<vmem>>, vector<8x128xf32>
    %20 = vector.shape_cast %19 : vector<8x128xf32> to vector<1x8x128xf32>
    %c0_11 = arith.constant 0 : index
    %c0_12 = arith.constant 0 : index
    %c0_13 = arith.constant 0 : index
    %21 = vector.load %arg1[%c0_11, %c0_12, %c0_13] : memref<1x8x128xf32, #tpu.memory_space<vmem>>, vector<1x8x128xf32>
    %22 = vector.broadcast %7 : vector<1x1x1xf32> to vector<1x8x128xf32>
    %23 = arith.subf %21, %22 : vector<1x8x128xf32>
    %24 = vector.broadcast %16 : vector<1x1x1xf32> to vector<1x8x128xf32>
    %25 = arith.mulf %23, %24 : vector<1x8x128xf32>
    %26 = arith.mulf %25, %18 : vector<1x8x128xf32>
    %27 = arith.addf %26, %20 : vector<1x8x128xf32>
    %c0_14 = arith.constant 0 : index
    %c0_15 = arith.constant 0 : index
    %c0_16 = arith.constant 0 : index
    %28 = vector.load %arg4[%c0_14, %c0_15, %c0_16] : memref<1x8x128xf32, #tpu.memory_space<vmem>>, vector<1x8x128xf32>
    tpu.vector_store %arg4[%c0_14, %c0_15, %c0_16], %27 {strides = array<i32>} : memref<1x8x128xf32, #tpu.memory_space<vmem>>, vector<1x8x128xf32>,
    return
  }
  func.func @transform_0(%arg0: i32) -> (i32, i32, i32) {
    %c0_i32 = arith.constant 0 : i32
    %c0_i32_0 = arith.constant 0 : i32
    %c0_i32_1 = arith.constant 0 : i32
    return %arg0, %c0_i32, %c0_i32_0 : i32, i32, i32
  }
  func.func @transform_1(%arg0: i32) -> (i32, i32) {
    %c0_i32 = arith.constant 0 : i32
    %c0_i32_0 = arith.constant 0 : i32
    %c0_i32_1 = arith.constant 0 : i32
    return %c0_i32, %c0_i32_0 : i32, i32
  }
  func.func @transform_2(%arg0: i32) -> (i32, i32) {
    %c0_i32 = arith.constant 0 : i32
    %c0_i32_0 = arith.constant 0 : i32
    %c0_i32_1 = arith.constant 0 : i32
    return %c0_i32, %c0_i32_0 : i32, i32
  }
  func.func @transform_3(%arg0: i32) -> (i32, i32, i32) {
    %c0_i32 = arith.constant 0 : i32
    %c0_i32_0 = arith.constant 0 : i32
    %c0_i32_1 = arith.constant 0 : i32
    return %arg0, %c0_i32, %c0_i32_0 : i32, i32, i32
  }
}

</mosaic_0001>

<llo_original>
// kernel: tpu_custom_call.1
$region0: #{tpu_custom_call.1}
  #allocation0 [shape = 'u32[]', space=smem, size = 0x4, offset = 0x4, fixed_abs, tag = 'smem constant byte address 0x4 - core index']
  #allocation1 [shape = 'u32[144,128]{1,0:T(1,128)}', space=vmem, size = 0x12000, scoped, tag = 'internal scratch']
  %s0 = inlined_call_operand.hbm [shape: f32[2,8,128], index: 0, kind: input, shape index: {}]
  %s1 = inlined_call_operand.hbm [shape: f32[8,128], index: 1, kind: input, shape index: {}]
  %s2 = inlined_call_operand.hbm [shape: f32[8,128], index: 2, kind: input, shape index: {}]
  %s3 = inlined_call_operand.hbm [shape: f32[2,8,128], index: 3, kind: output, shape index: {}]
  %s4 = sld [smem:[#allocation0]]
  $region57: #{tpu_custom_call.1} parent=0
    _
  %s6 = ssub.s32 1, %s4
  %s7 = scalar_select 0, %s6, %s4
  $region1: #{tpu_custom_call.1} parent=0
    #allocation2 [shape = 'u8[8192]{0}', space=vmem, size = 0x2000, scoped, tag = 'input window, operand 0']
    #allocation3 [shape = 's32[2]{0}', space=sflag, size = 0x8, scoped, tag = 'scoped memory for tpu_custom_call.1']
    #allocation4 [shape = 's32[2]{0}', space=sflag, size = 0x8, scoped, tag = 'scoped memory for tpu_custom_call.1']
    #allocation5 [shape = 'u8[4096]{0}', space=vmem, size = 0x1000, scoped, tag = 'input window, operand 1, single buffered']
    #allocation6 [shape = 's32[1]{0}', space=sflag, size = 0x4, scoped, tag = 'scoped memory for tpu_custom_call.1']
    #allocation7 [shape = 'u8[4096]{0}', space=vmem, size = 0x1000, scoped, tag = 'input window, operand 2, single buffered']
    #allocation8 [shape = 'u8[8192]{0}', space=vmem, size = 0x2000, scoped, tag = 'output window, operand 0']
    %8 = vsyncpa [#allocation3], 0
    %s9 = scalar_lea.sflag [#allocation3], 1
    %10 = vsyncpa %s9, 0
    %11 = vsyncpa [#allocation6], 0
    %12 = vsyncpa [#allocation4], 0
    %s13 = scalar_lea.sflag [#allocation4], 1
    %14 = vsyncpa %s13, 0
    loop: start=0, step=1, limit=4
    $region2: #{tpu_custom_call.1} parent=1 // loop_pre_header
      _
    $region3: #{tpu_custom_call.1} parent=1 // loop_header
      %s16 = sphi 0, %s20
      %p17 = scmp.ge.s32.totalorder %s16, 4
      %s26 = sphi 0, %s28
      %s29 = sphi 0, %s26
      %s30 = sphi 0, %s29
      %s46 = sphi 0, %s30
      %s50 = sphi 0, %s50
      %s52 = sphi 0, %s50
      %s53 = sphi 0, %s52
      %s67 = sphi 0, %s53
      %s71 = sphi 0, %s71
      %s73 = sphi 0, %s71
      %s74 = sphi 0, %s73
      %s88 = sphi 0, %s74
      %s94 = sphi 0, %s96
      %s97 = sphi 0, %s94
      %s98 = sphi 0, %s97
      %s114 = sphi 0, %s98
    $region4: #{tpu_custom_call.1} parent=1 // loop_header_branch
      %19 = sbr.rel (%p17) target = $region8
    $region5: #{tpu_custom_call.1} parent=1 // loop_body
      %s21 = ssub.s32 %s16, 1
      %s22 = ssub.s32 %s16, 2
      %s23 = sadd.s32 %s16, 1
      %s24 = ssub.s32 %s16, %s23
      %p25 = scmp.eq.s32.totalorder %s24, 0
      %s27 = sadd.s32 %s26, 1
      %s28 = scalar_select %p25, %s26, %s27
      %p31 = pneg %p25
      %p32 = scmp.eq.s32.totalorder %s16, 1
      %p33 = por %p31, %p32
      %p34 = scmp.ne.s32.totalorder %s26, %s29
      %p35 = scmp.eq.s32.totalorder %s16, 0
      %p36 = por %p34, %p35
      %p37 = scmp.ne.s32.totalorder %s26, %s29
      %p38 = scmp.eq.s32.totalorder %s21, 1
      %p39 = por %p37, %p38
      %p40 = scmp.ne.s32.totalorder %s29, %s30
      %p41 = scmp.eq.s32.totalorder %s21, 0
      %p42 = por %p40, %p41
      %p43 = scmp.ne.s32.totalorder %s29, %s30
      %p44 = scmp.eq.s32.totalorder %s22, 1
      %p45 = por %p43, %p44
      %p47 = scmp.ne.s32.totalorder %s30, %s46
      %p48 = scmp.eq.s32.totalorder %s22, 0
      %p49 = por %p47, %p48
      %s51 = sadd.s32 %s50, 1
      %p54 = scmp.eq.s32.totalorder %s16, 1
      %p55 = scmp.ne.s32.totalorder %s50, %s52
      %p56 = scmp.eq.s32.totalorder %s16, 0
      %p57 = por %p55, %p56
      %p58 = scmp.ne.s32.totalorder %s50, %s52
      %p59 = scmp.eq.s32.totalorder %s21, 1
      %p60 = por %p58, %p59
      %p61 = scmp.ne.s32.totalorder %s52, %s53
      %p62 = scmp.eq.s32.totalorder %s21, 0
      %p63 = por %p61, %p62
      %p64 = scmp.ne.s32.totalorder %s52, %s53
      %p65 = scmp.eq.s32.totalorder %s22, 1
      %p66 = por %p64, %p65
      %p68 = scmp.ne.s32.totalorder %s53, %s67
      %p69 = scmp.eq.s32.totalorder %s22, 0
      %p70 = por %p68, %p69
      %s72 = sadd.s32 %s71, 1
      %p75 = scmp.eq.s32.totalorder %s16, 1
      %p76 = scmp.ne.s32.totalorder %s71, %s73
      %p77 = scmp.eq.s32.totalorder %s16, 0
      %p78 = por %p76, %p77
      %p79 = scmp.ne.s32.totalorder %s71, %s73
      %p80 = scmp.eq.s32.totalorder %s21, 1
      %p81 = por %p79, %p80
      %p82 = scmp.ne.s32.totalorder %s73, %s74
      %p83 = scmp.eq.s32.totalorder %s21, 0
      %p84 = por %p82, %p83
      %p85 = scmp.ne.s32.totalorder %s73, %s74
      %p86 = scmp.eq.s32.totalorder %s22, 1
      %p87 = por %p85, %p86
      %p89 = scmp.ne.s32.totalorder %s74, %s88
      %p90 = scmp.eq.s32.totalorder %s22, 0
      %p91 = por %p89, %p90
      %s92 = ssub.s32 %s16, %s23
      %p93 = scmp.eq.s32.totalorder %s92, 0
      %s95 = sadd.s32 %s94, 1
      %s96 = scalar_select %p93, %s94, %s95
      %p99 = pneg %p93
      %p100 = scmp.eq.s32.totalorder %s16, 1
      %p101 = por %p99, %p100
      %p102 = scmp.ne.s32.totalorder %s94, %s97
      %p103 = scmp.eq.s32.totalorder %s16, 0
      %p104 = por %p102, %p103
      %p105 = scmp.ne.s32.totalorder %s94, %s97
      %p106 = scmp.eq.s32.totalorder %s21, 1
      %p107 = por %p105, %p106
      %p108 = scmp.ne.s32.totalorder %s97, %s98
      %p109 = scmp.eq.s32.totalorder %s21, 0
      %p110 = por %p108, %p109
      %p111 = scmp.ne.s32.totalorder %s97, %s98
      %p112 = scmp.eq.s32.totalorder %s22, 1
      %p113 = por %p111, %p112
      %p115 = scmp.ne.s32.totalorder %s98, %s114
      %p116 = scmp.eq.s32.totalorder %s22, 0
      %p117 = por %p115, %p116
      %p118 = scmp.le.s32.totalorder 1, %s16
      %p119 = scmp.lt.s32.totalorder %s16, 3
      %p120 = pnand %p118, %p119
      %p121 = pneg %p120
      // Predicated region
      $region9: #{tpu_custom_call.1} parent=5 // pred_check
        _
      $region10: #{tpu_custom_call.1} parent=5 // pred_check_branch
        %123 = sbr.rel (%p120) target = $region12
      $region11: #{tpu_custom_call.1} parent=5 // pred_region
        %s124 = ssub.s32 %s16, 1
        // Predicated region
        $region13: #{tpu_custom_call.1} parent=11 // pred_check
          %p125 = pneg %p63
        $region14: #{tpu_custom_call.1} parent=11 // pred_check_branch
          %127 = sbr.rel (%p125) target = $region16
        $region15: #{tpu_custom_call.1} parent=11 // pred_region
          %s129 = ssub.s32 128, 128
          %130 = vsyncadd [#allocation6], %s129
          %s132 = sshll.u32 [#allocation5], 4
          %s133 = int_to_ptr.vmem [resolvable:$true] %s132
          %135 = dma.hbm_to_vmem [thread:$0]  %s1, 128, %s133, [#allocation6]
        $region16: #{tpu_custom_call.1} parent=11 // pred_fallthru
          _
        // Predicated region
        $region17: #{tpu_custom_call.1} parent=11 // pred_check
          %p136 = pneg %p84
        $region18: #{tpu_custom_call.1} parent=11 // pred_check_branch
          %138 = sbr.rel (%p136) target = $region20
        $region19: #{tpu_custom_call.1} parent=11 // pred_region
          %s140 = ssub.s32 128, 128
          %141 = vsyncadd [#allocation6], %s140
          %s143 = sshll.u32 [#allocation7], 4
          %s144 = int_to_ptr.vmem [resolvable:$true] %s143
          %146 = dma.hbm_to_vmem [thread:$0]  %s2, 128, %s144, [#allocation6]
        $region20: #{tpu_custom_call.1} parent=11 // pred_fallthru
          _
      $region12: #{tpu_custom_call.1} parent=5 // pred_fallthru
        _
      %p147 = scmp.lt.s32.totalorder %s16, 2
      // Predicated region
      $region21: #{tpu_custom_call.1} parent=5 // pred_check
        %p148 = pneg %p147
      $region22: #{tpu_custom_call.1} parent=5 // pred_check_branch
        %150 = sbr.rel (%p148) target = $region24
      $region23: #{tpu_custom_call.1} parent=5 // pred_region
        // Predicated region
        $region25: #{tpu_custom_call.1} parent=23 // pred_check
          %p151 = pneg %p36
        $region26: #{tpu_custom_call.1} parent=23 // pred_check_branch
          %153 = sbr.rel (%p151) target = $region28
        $region27: #{tpu_custom_call.1} parent=23 // pred_region
          %s154 = sand.u32 %s26, 1
          %s155 = scalar_lea.sflag [#allocation3], %s154
          %s156 = sand.u32 %s26, 1
          %s157 = smul.addr %s156, 8
          %s158 = scalar_lea.vmem [#allocation2], %s157
          %s160 = ssub.s32 128, 128
          %161 = vsyncadd %s155, %s160
          %s162 = smul.addr %s16, 128
          %s163 = scalar_lea.hbm %s0, %s162
          %s165 = sshll.u32 %s158, 4
          %s166 = int_to_ptr.vmem [resolvable:$true] %s165
          %168 = dma.hbm_to_vmem [thread:$0]  %s163, 128, %s166, %s155
        $region28: #{tpu_custom_call.1} parent=23 // pred_fallthru
          _
      $region24: #{tpu_custom_call.1} parent=5 // pred_fallthru
        _
      %p169 = scmp.le.s32.totalorder 1, %s16
      %p170 = scmp.lt.s32.totalorder %s16, 3
      %p171 = pnand %p169, %p170
      %p172 = pneg %p171
      // Predicated region
      $region29: #{tpu_custom_call.1} parent=5 // pred_check
        _
      $region30: #{tpu_custom_call.1} parent=5 // pred_check_branch
        %174 = sbr.rel (%p171) target = $region32
      $region31: #{tpu_custom_call.1} parent=5 // pred_region
        %s175 = ssub.s32 %s16, 1
        %s176 = sand.u32 %s29, 1
        %s177 = scalar_lea.sflag [#allocation3], %s176
        %s178 = sand.u32 %s29, 1
        %s179 = smul.addr %s178, 8
        %s180 = scalar_lea.vmem [#allocation2], %s179
        // Predicated region
        $region33: #{tpu_custom_call.1} parent=31 // pred_check
          %p181 = pneg %p42
        $region34: #{tpu_custom_call.1} parent=31 // pred_check_branch
          %183 = sbr.rel (%p181) target = $region36
        $region35: #{tpu_custom_call.1} parent=31 // pred_region
          %184 = dma.done %s177, 128
        $region36: #{tpu_custom_call.1} parent=31 // pred_fallthru
          _
        // Predicated region
        $region37: #{tpu_custom_call.1} parent=31 // pred_check
          %p185 = pneg %p63
        $region38: #{tpu_custom_call.1} parent=31 // pred_check_branch
          %187 = sbr.rel (%p185) target = $region40
        $region39: #{tpu_custom_call.1} parent=31 // pred_region
          %188 = dma.done [#allocation6], 128
        $region40: #{tpu_custom_call.1} parent=31 // pred_fallthru
          _
        // Predicated region
        $region41: #{tpu_custom_call.1} parent=31 // pred_check
          %p189 = pneg %p84
        $region42: #{tpu_custom_call.1} parent=31 // pred_check_branch
          %191 = sbr.rel (%p189) target = $region44
        $region43: #{tpu_custom_call.1} parent=31 // pred_region
          %192 = dma.done [#allocation6], 128
        $region44: #{tpu_custom_call.1} parent=31 // pred_fallthru
          _
        %s193 = sand.u32 %s29, 1
        %s194 = scalar_lea.sflag [#allocation3], %s193
        %s195 = sand.u32 %s29, 1
        %s196 = smul.addr %s195, 8
        %s197 = scalar_lea.vmem [#allocation2], %s196
        %p198 = pneg %p42
        %p199 = pneg %p39
        %p200 = pneg %p63
        %p201 = pneg %p60
        %p202 = pneg %p84
        %p203 = pneg %p81
        %p204 = pneg %p110
        %p205 = pneg %p107
        %s206 = sand.u32 %s97, 1
        %s207 = scalar_lea.sflag [#allocation4], %s206
        %s208 = sand.u32 %s97, 1
        %s209 = smul.addr %s208, 8
        %s210 = scalar_lea.vmem [#allocation8], %s209
        %v211 = vld [vmem:[%s180] sm:$0xff]
        %212 = vadd.xlane.f32.xlu0 %v211
        %v213 = vpop.xlane.xlu0 %212
        %v214 = vrot.slane %v213, 4
        %v215 = vadd.f32 %v213, %v214
        %v216 = vrot.slane %v215, 2
        %v217 = vadd.f32 %v215, %v216
        %v218 = vrot.slane %v217, 1
        %v219 = vadd.f32 %v217, %v218
        %v220 = vmul.f32 %v211, %v211
        %221 = vadd.xlane.f32.xlu0 %v220
        %v222 = vpop.xlane.xlu0 %221
        %v223 = vrot.slane %v222, 4
        %v224 = vadd.f32 %v222, %v223
        %v225 = vrot.slane %v224, 2
        %v226 = vadd.f32 %v224, %v225
        %v227 = vrot.slane %v226, 1
        %v228 = vadd.f32 %v226, %v227
        %v229 = vmul.f32 %v219, 0.0009765625
        %v230 = vmul.f32 %v228, 0.0009765625
        %v231 = vmul.f32 %v229, %v229
        %v232 = vsub.f32 %v230, %v231
        %v233 = vmax.f32 %v232, 0.0
        %v234 = vadd.f32 %v233, 1e-05
        %v235 = vrsqrt.pop %v234
        %v236 = vld [vmem:[#allocation5] sm:$0xff]
        %v237 = vld [vmem:[#allocation7] sm:$0xff]
        %v238 = vsub.f32 %v211, %v229
        %v239 = vmul.f32 %v238, %v235
        %v240 = vmul.f32 %v239, %v236
        %v241 = vadd.f32 %v240, %v237
        %242 = vst [vmem:[%s210] sm:$0xff] %v241
        %s243 = sand.u32 %s97, 1
        %s244 = scalar_lea.sflag [#allocation4], %s243
        %s245 = sand.u32 %s97, 1
        %s246 = smul.addr %s245, 8
        %s247 = scalar_lea.vmem [#allocation8], %s246
        // Predicated region
        $region45: #{tpu_custom_call.1} parent=31 // pred_check
          %p248 = pneg %p107
        $region46: #{tpu_custom_call.1} parent=31 // pred_check_branch
          %250 = sbr.rel (%p248) target = $region48
        $region47: #{tpu_custom_call.1} parent=31 // pred_region
          %s252 = ssub.s32 128, 128
          %253 = vsyncadd %s244, %s252
          %s254 = smul.addr %s21, 128
          %s255 = scalar_lea.hbm %s3, %s254
          %s257 = sshll.u32 %s247, 4
          %s258 = int_to_ptr.vmem [resolvable:$true] %s257
          %260 = dma.vmem_to_hbm [thread:$0]  %s258, 128, %s255, %s244
        $region48: #{tpu_custom_call.1} parent=31 // pred_fallthru
          _
      $region32: #{tpu_custom_call.1} parent=5 // pred_fallthru
        _
      %p261 = scmp.le.s32.totalorder 2, %s16
      // Predicated region
      $region49: #{tpu_custom_call.1} parent=5 // pred_check
        %p262 = pneg %p261
      $region50: #{tpu_custom_call.1} parent=5 // pred_check_branch
        %264 = sbr.rel (%p262) target = $region52
      $region51: #{tpu_custom_call.1} parent=5 // pred_region
        %s265 = ssub.s32 %s16, 2
        // Predicated region
        $region53: #{tpu_custom_call.1} parent=51 // pred_check
          %p266 = pneg %p113
        $region54: #{tpu_custom_call.1} parent=51 // pred_check_branch
          %268 = sbr.rel (%p266) target = $region56
        $region55: #{tpu_custom_call.1} parent=51 // pred_region
          %s269 = sand.u32 %s98, 1
          %s270 = scalar_lea.sflag [#allocation4], %s269
          %s271 = sand.u32 %s98, 1
          %s272 = smul.addr %s271, 8
          %s273 = scalar_lea.vmem [#allocation8], %s272
          %274 = dma.done %s270, 128
        $region56: #{tpu_custom_call.1} parent=51 // pred_fallthru
          _
      $region52: #{tpu_custom_call.1} parent=5 // pred_fallthru
        _
    $region6: #{tpu_custom_call.1} parent=1 // loop_footer
      %s20 = sadd.s32 1, %s16
    $region7: #{tpu_custom_call.1} parent=1 // loop_footer_branch
      %15 = sbr.rel target = $region3
    $region8: #{tpu_custom_call.1} parent=1 // loop_exit
      _
    %275 = vsyncpa [#allocation3], 1
    %s276 = scalar_lea.sflag [#allocation3], 1
    %277 = vsyncpa %s276, 1
    %278 = vsyncpa [#allocation6], 1
    %279 = vsyncpa [#allocation4], 1
    %s280 = scalar_lea.sflag [#allocation4], 1
    %281 = vsyncpa %s280, 1

</llo_original>
